<compile_context>
chip_gen: v7x
topology: tpu7x:2x2x1
jax: 0.10.0
libtpu: 0.0.40
codegen_flags: <defaults>
</compile_context>

<pallas_src>
import functools

import jax
import jax.numpy as jnp
from jax import lax
from jax.experimental import pallas as pl
from jax.experimental.pallas import tpu as pltpu


def _round_up(x, m):
    return ((x + m - 1) // m) * m


def _linear_kernel(x_ref, w_ref, b_ref, o_ref, *, k_rem):
    k = pl.program_id(2)
    nk = pl.num_programs(2)

    @pl.when(k == 0)
    def _init():
        o_ref[...] = jnp.zeros_like(o_ref)

    x = x_ref[...]
    w = w_ref[...]
    if k_rem:  # static: only emitted when K % tk != 0
        # Zero the K-tail garbage on the final K block (keeps NaN/Inf junk out
        # of the accumulation). M/N tail garbage only reaches output rows/cols
        # that Pallas masks on writeback, so no masking is needed there.
        limit = jnp.where(k == nk - 1, k_rem, x.shape[1])
        kx = lax.broadcasted_iota(jnp.int32, x.shape, 1)
        kw = lax.broadcasted_iota(jnp.int32, w.shape, 0)
        x = jnp.where(kx < limit, x, 0)
        w = jnp.where(kw < limit, w, 0)

    # Accumulate straight into the (i, j)-resident f32 output block.
    o_ref[...] += jnp.dot(x, w, preferred_element_type=jnp.float32)

    @pl.when(k == nk - 1)
    def _bias():
        o_ref[...] += b_ref[...]  # (1, tn) broadcasts over (tm, tn)


def my_linear(x, weight, bias, *, tm=512, tn=1024, tk=1024, use_bf16=True):
    """x: (M, K), weight: (K, N), bias: (N,) -> (M, N) matching X @ W + b."""
    M, K = x.shape
    Kw, N = weight.shape
    assert K == Kw, "in_units mismatch"
    out_dtype = x.dtype

    # --- tile selection ----------------------------------------------------
    # Full-extent tile when the axis fits (always layout-legal); otherwise the
    # pre-aligned default tile, with partial tail blocks handled by Pallas.
    tm = M if M <= tm else tm
    tn = N if N <= tn else tn
    tk = K if K <= tk else tk

    # v7x megacore balance: if the whole output is a single (i, j) tile, split
    # N into >= 2 "parallel" blocks so the second TensorCore has work.
    if tm >= M and tn >= N and N >= 256:
        tn = _round_up(pl.cdiv(N, 2), 128)

    grid = (pl.cdiv(M, tm), pl.cdiv(N, tn), pl.cdiv(K, tk))  # reduction last
    k_rem = K % tk

    # bf16 MXU inputs (f32 accumulate) by default; use_bf16=False keeps strict
    # f32 parity with the PyTorch module.
    in_dtype = jnp.bfloat16 if use_bf16 else x.dtype
    xk = x.astype(in_dtype)
    wk = weight.astype(in_dtype)
    bias2d = bias.astype(jnp.float32).reshape(1, N)

    in_bytes = jnp.dtype(in_dtype).itemsize
    cost = pl.CostEstimate(
        flops=2 * M * N * K,
        # X is streamed once per N block column, W once per M block row.
        bytes_accessed=in_bytes * (grid[1] * M * K + grid[0] * K * N)
        + 4 * (M * N + N),
        transcendentals=0,
    )

    out = pl.pallas_call(
        functools.partial(_linear_kernel, k_rem=k_rem),
        out_shape=jax.ShapeDtypeStruct((M, N), jnp.float32),
        grid_spec=pltpu.PrefetchScalarGridSpec(
            num_scalar_prefetch=0,
            grid=grid,
            in_specs=[
                pl.BlockSpec((tm, tk), lambda i, j, k: (i, k)),
                pl.BlockSpec((tk, tn), lambda i, j, k: (k, j)),
                pl.BlockSpec((1, tn), lambda i, j, k: (0, j)),
            ],
            out_specs=pl.BlockSpec((tm, tn), lambda i, j, k: (i, j)),
        ),
        compiler_params=pltpu.CompilerParams(
            dimension_semantics=("parallel", "parallel", "arbitrary"),
            vmem_limit_bytes=32 * 1024 * 1024,
        ),
        cost_estimate=cost,
    )(xk, wk, bias2d)

    return out.astype(out_dtype)


if __name__ == "__main__":
    key = jax.random.PRNGKey(0)

    # --- Small test: module toy shapes, strict f32 path ---------------------
    in_units, out_units, batch = 32, 64, 8
    kx, kw, kb = jax.random.split(key, 3)
    x = jax.random.normal(kx, (batch, in_units), dtype=jnp.float32)
    w = jax.random.normal(kw, (in_units, out_units), dtype=jnp.float32)
    b = jax.random.normal(kb, (out_units,), dtype=jnp.float32)

    out = jax.block_until_ready(my_linear(x, w, b, use_bf16=False))
    ref = x @ w + b
    assert out.shape == (batch, out_units)
    assert jnp.allclose(out, ref, atol=1e-5, rtol=1e-5), "mismatch (small f32)"

    # --- Ragged test: multi-block grid, K-tail masking, M/N partial blocks,
    #     bf16 MXU path (compare vs bf16-rounded-input f32 reference). -------
    M2, K2, N2 = 200, 300, 250
    k1, k2, k3 = jax.random.split(jax.random.PRNGKey(1), 3)
    x2 = jax.random.normal(k1, (M2, K2), dtype=jnp.float32)
    w2 = jax.random.normal(k2, (K2, N2), dtype=jnp.float32)
    b2 = jax.random.normal(k3, (N2,), dtype=jnp.float32)
    out2 = jax.block_until_ready(my_linear(x2, w2, b2, tm=128, tn=128, tk=128))
    ref2 = (x2.astype(jnp.bfloat16).astype(jnp.float32)
            @ w2.astype(jnp.bfloat16).astype(jnp.float32)) + b2
    assert out2.shape == (M2, N2)
    assert jnp.allclose(out2, ref2, atol=1e-2, rtol=1e-2), "mismatch (ragged)"

    # --- Larger aligned test: default big tiles + megacore N split ----------
    M3, K3, N3 = 512, 1024, 512
    k1, k2, k3 = jax.random.split(jax.random.PRNGKey(2), 3)
    x3 = jax.random.normal(k1, (M3, K3), dtype=jnp.float32)
    w3 = jax.random.normal(k2, (K3, N3), dtype=jnp.float32)
    b3 = jax.random.normal(k3, (N3,), dtype=jnp.float32)
    out3 = jax.block_until_ready(my_linear(x3, w3, b3))
    ref3 = (x3.astype(jnp.bfloat16).astype(jnp.float32)
            @ w3.astype(jnp.bfloat16).astype(jnp.float32)) + b3
    assert out3.shape == (M3, N3)
    assert jnp.allclose(out3, ref3, atol=2e-2, rtol=2e-2), "mismatch (large)"

    print("KERNEL_OK")
</pallas_src>

<mosaic_0001>
module attributes {stable_mosaic.version = 11 : i64} {
  func.func @_linear_kernel(%arg0: i32, %arg1: i32, %arg2: i32, %arg3: memref<8x32xf32, #tpu.memory_space<vmem>>, %arg4: memref<32x64xf32, #tpu.memory_space<vmem>>, %arg5: memref<1x64xf32, #tpu.memory_space<vmem>>, %arg6: memref<8x64xf32, #tpu.memory_space<vmem>>) attributes {dimension_semantics = [#tpu.dimension_semantics<parallel>, #tpu.dimension_semantics<parallel>, #tpu.dimension_semantics<arbitrary>], iteration_bounds = array<i64: 1, 1, 1>, scalar_prefetch = 0 : i64, scratch_operands = 0 : i64, tpu.core_type = #tpu.core_type<tc>, window_params = [{transform_indices = @transform_0, window_bounds = array<i64: 8, 32>}, {transform_indices = @transform_1, window_bounds = array<i64: 32, 64>}, {transform_indices = @transform_2, window_bounds = array<i64: 1, 64>}, {transform_indices = @transform_3, window_bounds = array<i64: 8, 64>}]} {
    %c0_i32 = arith.constant 0 : i32
    %0 = arith.cmpi eq, %arg2, %c0_i32 : i32
    %1 = arith.extui %0 : i1 to i32
    %c0_i32_0 = arith.constant 0 : i32
    %2 = arith.cmpi ne, %1, %c0_i32_0 : i32
    scf.if %2 {
      %cst_10 = arith.constant 0.000000e+00 : f32
      %12 = vector.broadcast %cst_10 : f32 to vector<8x64xf32>
      %c0_11 = arith.constant 0 : index
      %c0_12 = arith.constant 0 : index
      %13 = vector.load %arg6[%c0_11, %c0_12] : memref<8x64xf32, #tpu.memory_space<vmem>>, vector<8x64xf32>
      tpu.vector_store %arg6[%c0_11, %c0_12], %12 {strides = array<i32>} : memref<8x64xf32, #tpu.memory_space<vmem>>, vector<8x64xf32>,
    } else {
    }
    %c0 = arith.constant 0 : index
    %c0_1 = arith.constant 0 : index
    %3 = vector.load %arg3[%c0, %c0_1] : memref<8x32xf32, #tpu.memory_space<vmem>>, vector<8x32xf32>
    %c0_2 = arith.constant 0 : index
    %c0_3 = arith.constant 0 : index
    %4 = vector.load %arg4[%c0_2, %c0_3] : memref<32x64xf32, #tpu.memory_space<vmem>>, vector<32x64xf32>
    %c0_4 = arith.constant 0 : index
    %c0_5 = arith.constant 0 : index
    %5 = vector.load %arg6[%c0_4, %c0_5] : memref<8x64xf32, #tpu.memory_space<vmem>>, vector<8x64xf32>
    %cst = arith.constant dense<0.000000e+00> : vector<8x64xf32>
    %6 = tpu.matmul %3, %4, %cst {dimension_numbers = #tpu.dot_dimension_numbers<[1], [0], [0], [1], [0, 0, 1, 1], [], []>} : vector<8x32xf32>, vector<32x64xf32>, vector<8x64xf32> -> vector<8x64xf32>
    %7 = arith.addf %5, %6 : vector<8x64xf32>
    %c0_6 = arith.constant 0 : index
    %c0_7 = arith.constant 0 : index
    %8 = vector.load %arg6[%c0_6, %c0_7] : memref<8x64xf32, #tpu.memory_space<vmem>>, vector<8x64xf32>
    tpu.vector_store %arg6[%c0_6, %c0_7], %7 {strides = array<i32>} : memref<8x64xf32, #tpu.memory_space<vmem>>, vector<8x64xf32>,
    %c0_i32_8 = arith.constant 0 : i32
    %9 = arith.cmpi eq, %arg2, %c0_i32_8 : i32
    %10 = arith.extui %9 : i1 to i32
    %c0_i32_9 = arith.constant 0 : i32
    %11 = arith.cmpi ne, %10, %c0_i32_9 : i32
    scf.if %11 {
      %c0_10 = arith.constant 0 : index
      %c0_11 = arith.constant 0 : index
      %12 = vector.load %arg6[%c0_10, %c0_11] : memref<8x64xf32, #tpu.memory_space<vmem>>, vector<8x64xf32>
      %c0_12 = arith.constant 0 : index
      %c0_13 = arith.constant 0 : index
      %13 = vector.load %arg5[%c0_12, %c0_13] : memref<1x64xf32, #tpu.memory_space<vmem>>, vector<1x64xf32>
      %14 = vector.broadcast %13 : vector<1x64xf32> to vector<8x64xf32>
      %15 = arith.addf %12, %14 : vector<8x64xf32>
      %c0_14 = arith.constant 0 : index
      %c0_15 = arith.constant 0 : index
      %16 = vector.load %arg6[%c0_14, %c0_15] : memref<8x64xf32, #tpu.memory_space<vmem>>, vector<8x64xf32>
      tpu.vector_store %arg6[%c0_14, %c0_15], %15 {strides = array<i32>} : memref<8x64xf32, #tpu.memory_space<vmem>>, vector<8x64xf32>,
    } else {
    }
    return
  }
  func.func @transform_0(%arg0: i32, %arg1: i32, %arg2: i32) -> (i32, i32) {
    %c0_i32 = arith.constant 0 : i32
    return %arg0, %arg2 : i32, i32
  }
  func.func @transform_1(%arg0: i32, %arg1: i32, %arg2: i32) -> (i32, i32) {
    %c0_i32 = arith.constant 0 : i32
    return %arg2, %arg1 : i32, i32
  }
  func.func @transform_2(%arg0: i32, %arg1: i32, %arg2: i32) -> (i32, i32) {
    %c0_i32 = arith.constant 0 : i32
    %c0_i32_0 = arith.constant 0 : i32
    return %c0_i32, %arg1 : i32, i32
  }
  func.func @transform_3(%arg0: i32, %arg1: i32, %arg2: i32) -> (i32, i32) {
    %c0_i32 = arith.constant 0 : i32
    return %arg0, %arg1 : i32, i32
  }
}

</mosaic_0001>

<llo_original>
// kernel: tpu_custom_call.1
$region0: #{tpu_custom_call.1}
  #allocation0 [shape = 'u32[]', space=smem, size = 0x4, offset = 0x4, fixed_abs, tag = 'smem constant byte address 0x4 - core index']
  #allocation1 [shape = 'u32[144,128]{1,0:T(1,128)}', space=vmem, size = 0x12000, scoped, tag = 'internal scratch']
  %s0 = inlined_call_operand.hbm [shape: f32[8,32], index: 0, kind: input, shape index: {}]
  %s1 = inlined_call_operand.hbm [shape: f32[32,64], index: 1, kind: input, shape index: {}]
  %s2 = inlined_call_operand.vmem [shape: f32[1,64], index: 2, kind: input, shape index: {}]
  %s3 = inlined_call_operand.hbm [shape: f32[8,64], index: 3, kind: output, shape index: {}]
  %s4 = sld [smem:[#allocation0]]
  $region38: #{tpu_custom_call.1} parent=0
    _
  %s6 = ssub.s32 1, %s4
  %s7 = scalar_select 0, %s6, %s4
  $region1: #{tpu_custom_call.1} parent=0
    #allocation2 [shape = 'u8[4096]{0}', space=vmem, size = 0x1000, scoped, tag = 'input window, operand 0, single buffered']
    #allocation3 [shape = 's32[1]{0}', space=sflag, size = 0x4, scoped, tag = 'scoped memory for tpu_custom_call.1']
    #allocation4 [shape = 's32[1]{0}', space=sflag, size = 0x4, scoped, tag = 'scoped memory for tpu_custom_call.1']
    #allocation5 [shape = 'u8[16384]{0}', space=vmem, size = 0x4000, scoped, tag = 'input window, operand 1, single buffered']
    #allocation6 [shape = 's32[1]{0}', space=sflag, size = 0x4, scoped, tag = 'scoped memory for tpu_custom_call.1']
    #allocation7 [shape = 'u8[4096]{0}', space=vmem, size = 0x1000, scoped, tag = 'output window, operand 0, single buffered']
    %8 = vsyncpa [#allocation3], 0
    %9 = vsyncpa [#allocation6], 0
    %10 = vsyncpa [#allocation4], 0
    // Predicated region
    $region2: #{tpu_custom_call.1} parent=1 // pred_check
      _
    $region3: #{tpu_custom_call.1} parent=1 // pred_check_branch
      %12 = sbr.rel (0) target = $region5
    $region4: #{tpu_custom_call.1} parent=1 // pred_region
      %s14 = ssub.s32 128, 128
      %15 = vsyncadd [#allocation3], %s14
      %s17 = sshll.u32 [#allocation2], 4
      %s18 = int_to_ptr.vmem [resolvable:$true] %s17
      %20 = dma.hbm_to_vmem [thread:$0]  %s0, 128, %s18, [#allocation3]
    $region5: #{tpu_custom_call.1} parent=1 // pred_fallthru
      _
    // Predicated region
    $region6: #{tpu_custom_call.1} parent=1 // pred_check
      _
    $region7: #{tpu_custom_call.1} parent=1 // pred_check_branch
      %22 = sbr.rel (0) target = $region9
    $region8: #{tpu_custom_call.1} parent=1 // pred_region
      %s24 = ssub.s32 512, 512
      %25 = vsyncadd [#allocation6], %s24
      %s26 = sshll.u32 [#allocation5], 4
      %s27 = int_to_ptr.vmem [resolvable:$true] %s26
      %32 = dma.hbm_to_vmem [thread:$0]  %s1, 512, %s27, [#allocation6], 128, 128, 8
    $region9: #{tpu_custom_call.1} parent=1 // pred_fallthru
      _
    // Predicated region
    $region10: #{tpu_custom_call.1} parent=1 // pred_check
      _
    $region11: #{tpu_custom_call.1} parent=1 // pred_check_branch
      %34 = sbr.rel (0) target = $region13
    $region12: #{tpu_custom_call.1} parent=1 // pred_region
      _
    $region13: #{tpu_custom_call.1} parent=1 // pred_fallthru
      _
    // Predicated region
    $region14: #{tpu_custom_call.1} parent=1 // pred_check
      _
    $region15: #{tpu_custom_call.1} parent=1 // pred_check_branch
      %36 = sbr.rel (0) target = $region17
    $region16: #{tpu_custom_call.1} parent=1 // pred_region
      %37 = dma.done [#allocation3], 128
    $region17: #{tpu_custom_call.1} parent=1 // pred_fallthru
      _
    // Predicated region
    $region18: #{tpu_custom_call.1} parent=1 // pred_check
      _
    $region19: #{tpu_custom_call.1} parent=1 // pred_check_branch
      %39 = sbr.rel (0) target = $region21
    $region20: #{tpu_custom_call.1} parent=1 // pred_region
      %40 = dma.done [#allocation6], 512
    $region21: #{tpu_custom_call.1} parent=1 // pred_fallthru
      _
    %p41 = scmp.eq.s32.totalorder 0, 0
    // Predicated region
    $region22: #{tpu_custom_call.1} parent=1 // pred_check
      %p42 = pneg %p41
    $region23: #{tpu_custom_call.1} parent=1 // pred_check_branch
      %44 = sbr.rel (%p42) target = $region25
    $region24: #{tpu_custom_call.1} parent=1 // pred_region
      %vm45 = vcmask 523264
      %46 = vst.msk [vmem:[#allocation7] sm:$0xff] %vm45, 0.0
    $region25: #{tpu_custom_call.1} parent=1 // pred_fallthru
      _
    %v47 = vld [vmem:[#allocation2] sm:$0xff]
    %v48 = vld [vmem:[#allocation5] sm:$0xff]
    %v49 = vld [vmem:[#allocation5 + $0x8] sm:$0xff]
    %v50 = vld [vmem:[#allocation5 + $0x10] sm:$0xff]
    %v51 = vld [vmem:[#allocation5 + $0x18] sm:$0xff]
    %v52 = vld [vmem:[#allocation7] sm:$0xff]
    %vm53 = vcmask 261120
    %v55 = vsel %vm53, %v47, 0
    %57 = vmatprep.subr.mxu0 0.0
    %58 = vmatpush1.msra.mxu0 %v48
    %59 = vmatprep.subr.mxu0 0.0
    %60 = vmatpush1.msra.mxu0 %v49
    %61 = vmatprep.subr.mxu0 0.0
    %62 = vmatpush1.msra.mxu0 %v50
    %63 = vmatprep.subr.mxu0 0.0
    %64 = vmatpush1.msra.mxu0 %v51
    %65 = vmatprep.subr.mxu0 0.0
    %66 = vmatpush1.msra.mxu0 0.0
    %67 = vmatprep.subr.mxu0 0.0
    %68 = vmatpush1.msra.mxu0 0.0
    %69 = vmatprep.subr.mxu0 0.0
    %70 = vmatpush1.msra.mxu0 0.0
    %71 = vmatprep.subr.mxu0 0.0
    %72 = vmatpush1.msra.mxu0 0.0
    %73 = vmatprep.subr.mxu0 0.0
    %74 = vmatpush1.msra.mxu0 0.0
    %75 = vmatprep.subr.mxu0 0.0
    %76 = vmatpush1.msra.mxu0 0.0
    %77 = vmatprep.subr.mxu0 0.0
    %78 = vmatpush1.msra.mxu0 0.0
    %79 = vmatprep.subr.mxu0 0.0
    %80 = vmatpush1.msra.mxu0 0.0
    %81 = vmatprep.subr.mxu0 0.0
    %82 = vmatpush1.msra.mxu0 0.0
    %83 = vmatprep.subr.mxu0 0.0
    %84 = vmatpush1.msra.mxu0 0.0
    %85 = vmatprep.subr.mxu0 0.0
    %86 = vmatpush1.msra.mxu0 0.0
    %87 = vmatprep.subr.mxu0 0.0
    %88 = vmatpush1.msra.mxu0 0.0
    %89 = vmatprep.subr.mxu0 0.0
    %90 = vmatpush1.msra.mxu0 0.0
    %91 = vmatprep.subr.mxu0 0.0
    %92 = vmatpush1.msra.mxu0 0.0
    %93 = vmatprep.subr.mxu0 0.0
    %94 = vmatpush1.msra.mxu0 0.0
    %95 = vmatprep.subr.mxu0 0.0
    %96 = vmatpush1.msra.mxu0 0.0
    %97 = vmatprep.subr.mxu0 0.0
    %98 = vmatpush1.msra.mxu0 0.0
    %99 = vmatprep.subr.mxu0 0.0
    %100 = vmatpush1.msra.mxu0 0.0
    %101 = vmatprep.subr.mxu0 0.0
    %102 = vmatpush1.msra.mxu0 0.0
    %103 = vmatprep.subr.mxu0 0.0
    %104 = vmatpush1.msra.mxu0 0.0
    %105 = vmatprep.subr.mxu0 0.0
    %106 = vmatpush1.msra.mxu0 0.0
    %107 = vmatprep.subr.mxu0 0.0
    %108 = vmatpush1.msra.mxu0 0.0
    %109 = vmatprep.subr.mxu0 0.0
    %110 = vmatpush1.msra.mxu0 0.0
    %111 = vmatprep.subr.mxu0 0.0
    %112 = vmatpush1.msra.mxu0 0.0
    %113 = vmatprep.subr.mxu0 0.0
    %114 = vmatpush1.msra.mxu0 0.0
    %115 = vmatprep.subr.mxu0 0.0
    %116 = vmatpush1.msra.mxu0 0.0
    %117 = vmatprep.subr.mxu0 0.0
    %118 = vmatpush1.msra.mxu0 0.0
    %119 = vmatprep.subr.mxu0 0.0
    %120 = vmatpush1.msra.mxu0 0.0
    %121 = vmatprep.mubr.f32.mxu0 0.0
    %122 = vmatmul.mubr.f32.gmra.mrb[0].mxu0 %v55
    %v123 = vpop.f32.mrb[0].mxu0
    %v124 = vadd.f32 0.0, %v123
    %v125 = vpop.f32.mrb[0].mxu0
    %126 = vdwg.mxu0
    %v127 = vadd.f32 %v52, %v124
    %vm128 = vcmask 523264
    %129 = vst.msk [vmem:[#allocation7] sm:$0xff] %vm128, %v127
    // Predicated region
    $region26: #{tpu_custom_call.1} parent=1 // pred_check
      %p130 = pneg %p41
    $region27: #{tpu_custom_call.1} parent=1 // pred_check_branch
      %132 = sbr.rel (%p130) target = $region29
    $region28: #{tpu_custom_call.1} parent=1 // pred_region
      %v133 = vld [vmem:[#allocation7] sm:$0xff]
      %v134 = vld [vmem:[%s2] sm:$0x1]
      %v136 = vlaneseq
      %v137 = vshrl.u32 %v136, 7
      %v138 = vsub.s32 0, %v137
      %v139 = vrot.slane %v134, %v138
      %v141 = vadd.f32 %v133, %v139
      %142 = vst.msk [vmem:[#allocation7] sm:$0xff] %vm128, %v141
    $region29: #{tpu_custom_call.1} parent=1 // pred_fallthru
      _
    // Predicated region
    $region30: #{tpu_custom_call.1} parent=1 // pred_check
      _
    $region31: #{tpu_custom_call.1} parent=1 // pred_check_branch
      %144 = sbr.rel (0) target = $region33
    $region32: #{tpu_custom_call.1} parent=1 // pred_region
      %s146 = ssub.s32 128, 128
      %147 = vsyncadd [#allocation4], %s146
      %s149 = sshll.u32 [#allocation7], 4
      %s150 = int_to_ptr.vmem [resolvable:$true] %s149
      %152 = dma.vmem_to_hbm [thread:$0]  %s150, 128, %s3, [#allocation4]
    $region33: #{tpu_custom_call.1} parent=1 // pred_fallthru
      _
    // Predicated region
    $region34: #{tpu_custom_call.1} parent=1 // pred_check
      _
    $region35: #{tpu_custom_call.1} parent=1 // pred_check_branch
      %154 = sbr.rel (0) target = $region37
    $region36: #{tpu_custom_call.1} parent=1 // pred_region
      %155 = dma.done [#allocation4], 128
    $region37: #{tpu_custom_call.1} parent=1 // pred_fallthru
      _
    %156 = vsyncpa [#allocation3], 1
    %157 = vsyncpa [#allocation6], 1
    %158 = vsyncpa [#allocation4], 1

</llo_original>
